<compile_context>
chip_gen: v7x
topology: tpu7x:2x2x1
jax: 0.10.0
libtpu: 0.0.40
codegen_flags: <defaults>
</compile_context>

<pallas_src>
import functools

import jax
import jax.numpy as jnp
from jax.experimental import pallas as pl
from jax.experimental.pallas import tpu as pltpu


def _dense_layer_kernel(x_ref, scale_ref, shift_ref, w_ref, out_ref, *, pad, c_in, growth):
    del growth
    L = x_ref.shape[2]
    K = w_ref.shape[1] // c_in

    x = x_ref[0]                                   # (C_in, L), input dtype

    # BN (eval, folded) + ReLU in f32. scale/shift are (C_in, 1) -> broadcast over lanes.
    h = jnp.maximum(x.astype(jnp.float32) * scale_ref[...] + shift_ref[...], 0.0)

    # Build the K lane-shifted taps (zero "same" padding applied AFTER BN+ReLU),
    # stack along the sublane axis, and do ONE (G, K*C_in) @ (K*C_in, L) MXU dot.
    taps = []
    for k in range(K):                             # static unroll
        off = k - pad
        if off < 0:
            t = jnp.concatenate(
                [jnp.zeros((c_in, -off), h.dtype), h[:, :L + off]], axis=1)
        elif off > 0:
            t = jnp.concatenate(
                [h[:, off:], jnp.zeros((c_in, off), h.dtype)], axis=1)
        else:
            t = h
        taps.append(t)
    stacked = jnp.concatenate(taps, axis=0)        # (K*C_in, L)

    y = jnp.dot(w_ref[...], stacked, preferred_element_type=jnp.float32)   # (G, L)

    # torch.cat([x, out], dim=1) written straight into the output block
    # (sublane offset c_in is tile-aligned when C_in % 8 == 0).
    out_ref[0, :c_in, :] = x
    out_ref[0, c_in:, :] = y.astype(out_ref.dtype)


def dense_layer_1d(x_ncl, gamma, beta, running_mean, running_var, conv_w, *, eps=1e-5):
    """x_ncl: (N, C_in, L) like PyTorch. conv_w: (G, C_in, K). Returns (N, C_in+G, L)."""
    N, C_in, L = x_ncl.shape
    G, _, K = conv_w.shape
    pad = (K - 1) // 2
    C_out = C_in + G

    # Fold eval-mode BatchNorm into per-channel scale/shift (f32), laid out (C_in, 1)
    # so each channel sits on its own sublane and broadcasts along lanes.
    inv_std = 1.0 / jnp.sqrt(running_var.astype(jnp.float32) + eps)
    g32 = gamma.astype(jnp.float32)
    scale = (g32 * inv_std).reshape(C_in, 1)
    shift = (beta.astype(jnp.float32)
             - running_mean.astype(jnp.float32) * g32 * inv_std).reshape(C_in, 1)

    # (G, C_in, K) -> (G, K*C_in): tap-major rows matching the in-kernel stacked RHS.
    w2d = jnp.transpose(conv_w, (0, 2, 1)).reshape(G, K * C_in).astype(jnp.float32)

    kernel = functools.partial(_dense_layer_kernel, pad=pad, c_in=C_in, growth=G)

    itemsize = jnp.dtype(x_ncl.dtype).itemsize
    cost = pl.CostEstimate(
        flops=2 * N * L * K * C_in * G + 3 * N * C_in * L,
        transcendentals=0,
        bytes_accessed=(N * C_in * L + N * C_out * L) * itemsize
                       + (2 * C_in + G * K * C_in) * 4,
    )

    return pl.pallas_call(
        kernel,
        out_shape=jax.ShapeDtypeStruct((N, C_out, L), x_ncl.dtype),
        grid_spec=pltpu.PrefetchScalarGridSpec(
            num_scalar_prefetch=0,
            grid=(N,),
            in_specs=[
                pl.BlockSpec((1, C_in, L), lambda n: (n, 0, 0)),
                pl.BlockSpec((C_in, 1), lambda n: (0, 0)),
                pl.BlockSpec((C_in, 1), lambda n: (0, 0)),
                pl.BlockSpec((G, K * C_in), lambda n: (0, 0)),
            ],
            out_specs=pl.BlockSpec((1, C_out, L), lambda n: (n, 0, 0)),
        ),
        compiler_params=pltpu.CompilerParams(dimension_semantics=("parallel",)),
        cost_estimate=cost,
    )(x_ncl, scale, shift, w2d)


def _reference(x_ncl, gamma, beta, running_mean, running_var, conv_w, eps=1e-5):
    """Pure-JAX reference matching the PyTorch module (eval mode, drop_rate=0)."""
    G, _, K = conv_w.shape
    pad = (K - 1) // 2
    xhat = (x_ncl - running_mean[None, :, None]) / jnp.sqrt(running_var[None, :, None] + eps)
    h = jnp.maximum(xhat * gamma[None, :, None] + beta[None, :, None], 0.0)
    out = jax.lax.conv_general_dilated(
        h, conv_w, window_strides=(1,), padding=((pad, pad),),
        dimension_numbers=("NCH", "OIH", "NCH"))
    return jnp.concatenate([x_ncl, out], axis=1)


if __name__ == "__main__":
    # Small but lane-friendly shapes: L multiple of 128, C_in multiple of 8,
    # N=4 so v7x gets >=2 parallel grid steps per TensorCore.
    N, C_in, L, G, K = 4, 16, 128, 8, 3

    key = jax.random.PRNGKey(0)
    k_x, k_w, k_g, k_b, k_m, k_v = jax.random.split(key, 6)

    x = jax.random.normal(k_x, (N, C_in, L), dtype=jnp.float32)
    conv_w = 0.1 * jax.random.normal(k_w, (G, C_in, K), dtype=jnp.float32)
    gamma = 1.0 + 0.1 * jax.random.normal(k_g, (C_in,), dtype=jnp.float32)
    beta = 0.1 * jax.random.normal(k_b, (C_in,), dtype=jnp.float32)
    running_mean = 0.1 * jax.random.normal(k_m, (C_in,), dtype=jnp.float32)
    running_var = jnp.abs(jax.random.normal(k_v, (C_in,), dtype=jnp.float32)) + 0.5

    out = dense_layer_1d(x, gamma, beta, running_mean, running_var, conv_w)
    out = jax.block_until_ready(out)

    ref = _reference(x, gamma, beta, running_mean, running_var, conv_w)
    assert out.shape == (N, C_in + G, L), out.shape
    assert jnp.allclose(out, ref, atol=1e-4, rtol=1e-4), float(jnp.max(jnp.abs(out - ref)))
    print("KERNEL_OK")
</pallas_src>

<mosaic_0001>
module attributes {stable_mosaic.version = 11 : i64} {
  func.func @_dense_layer_kernel(%arg0: i32, %arg1: memref<1x16x128xf32, #tpu.memory_space<vmem>>, %arg2: memref<16x1xf32, #tpu.memory_space<vmem>>, %arg3: memref<16x1xf32, #tpu.memory_space<vmem>>, %arg4: memref<8x48xf32, #tpu.memory_space<vmem>>, %arg5: memref<1x24x128xf32, #tpu.memory_space<vmem>>) attributes {dimension_semantics = [#tpu.dimension_semantics<parallel>], iteration_bounds = array<i64: 4>, scalar_prefetch = 0 : i64, scratch_operands = 0 : i64, tpu.core_type = #tpu.core_type<tc>, window_params = [{transform_indices = @transform_0, window_bounds = array<i64: 1, 16, 128>}, {pipeline_mode = #tpu.pipeline_mode<synchronous>, transform_indices = @transform_1, window_bounds = array<i64: 16, 1>}, {pipeline_mode = #tpu.pipeline_mode<synchronous>, transform_indices = @transform_2, window_bounds = array<i64: 16, 1>}, {pipeline_mode = #tpu.pipeline_mode<synchronous>, transform_indices = @transform_3, window_bounds = array<i64: 8, 48>}, {transform_indices = @transform_4, window_bounds = array<i64: 1, 24, 128>}]} {
    %c0 = arith.constant 0 : index
    %c0_0 = arith.constant 0 : index
    %c0_1 = arith.constant 0 : index
    %0 = vector.load %arg1[%c0, %c0_0, %c0_1] : memref<1x16x128xf32, #tpu.memory_space<vmem>>, vector<1x16x128xf32>
    %1 = vector.shape_cast %0 : vector<1x16x128xf32> to vector<16x128xf32>
    %c0_2 = arith.constant 0 : index
    %c0_3 = arith.constant 0 : index
    %2 = vector.load %arg2[%c0_2, %c0_3] : memref<16x1xf32, #tpu.memory_space<vmem>>, vector<16x1xf32>
    %3 = vector.broadcast %2 : vector<16x1xf32> to vector<16x128xf32>
    %4 = arith.mulf %1, %3 : vector<16x128xf32>
    %c0_4 = arith.constant 0 : index
    %c0_5 = arith.constant 0 : index
    %5 = vector.load %arg3[%c0_4, %c0_5] : memref<16x1xf32, #tpu.memory_space<vmem>>, vector<16x1xf32>
    %6 = vector.broadcast %5 : vector<16x1xf32> to vector<16x128xf32>
    %7 = arith.addf %4, %6 : vector<16x128xf32>
    %cst = arith.constant 0.000000e+00 : f32
    %8 = vector.broadcast %cst : f32 to vector<16x128xf32>
    %9 = arith.maximumf %7, %8 : vector<16x128xf32>
    %cst_6 = arith.constant 0.000000e+00 : f32
    %10 = vector.broadcast %cst_6 : f32 to vector<16x1xf32>
    %11 = vector.extract_strided_slice %9 {offsets = [0, 0], sizes = [16, 127], strides = [1, 1]} : vector<16x128xf32> to vector<16x127xf32>
    %12 = tpu.concatenate %10, %11 in 1 : vector<16x1xf32>, vector<16x127xf32> -> vector<16x128xf32>
    %13 = vector.extract_strided_slice %9 {offsets = [0, 1], sizes = [16, 127], strides = [1, 1]} : vector<16x128xf32> to vector<16x127xf32>
    %cst_7 = arith.constant 0.000000e+00 : f32
    %14 = vector.broadcast %cst_7 : f32 to vector<16x1xf32>
    %15 = tpu.concatenate %13, %14 in 1 : vector<16x127xf32>, vector<16x1xf32> -> vector<16x128xf32>
    %16 = tpu.concatenate %12, %9, %15 in 0 : vector<16x128xf32>, vector<16x128xf32>, vector<16x128xf32> -> vector<48x128xf32>
    %c0_8 = arith.constant 0 : index
    %c0_9 = arith.constant 0 : index
    %17 = vector.load %arg4[%c0_8, %c0_9] : memref<8x48xf32, #tpu.memory_space<vmem>>, vector<8x48xf32>
    %cst_10 = arith.constant dense<0.000000e+00> : vector<8x128xf32>
    %18 = tpu.matmul %17, %16, %cst_10 {dimension_numbers = #tpu.dot_dimension_numbers<[1], [0], [0], [1], [0, 0, 1, 1], [], []>} : vector<8x48xf32>, vector<48x128xf32>, vector<8x128xf32> -> vector<8x128xf32>
    %c0_11 = arith.constant 0 : index
    %c0_12 = arith.constant 0 : index
    %c0_13 = arith.constant 0 : index
    %19 = vector.load %arg5[%c0_11, %c0_12, %c0_13] : memref<1x24x128xf32, #tpu.memory_space<vmem>>, vector<1x16x128xf32>
    %20 = vector.shape_cast %19 : vector<1x16x128xf32> to vector<16x128xf32>
    %21 = vector.shape_cast %1 : vector<16x128xf32> to vector<1x16x128xf32>
    tpu.vector_store %arg5[%c0_11, %c0_12, %c0_13], %21 {strides = array<i32>} : memref<1x24x128xf32, #tpu.memory_space<vmem>>, vector<1x16x128xf32>,
    %c0_14 = arith.constant 0 : index
    %c16 = arith.constant 16 : index
    %c0_15 = arith.constant 0 : index
    %22 = vector.load %arg5[%c0_14, %c16, %c0_15] : memref<1x24x128xf32, #tpu.memory_space<vmem>>, vector<1x8x128xf32>
    %23 = vector.shape_cast %22 : vector<1x8x128xf32> to vector<8x128xf32>
    %24 = vector.shape_cast %18 : vector<8x128xf32> to vector<1x8x128xf32>
    tpu.vector_store %arg5[%c0_14, %c16, %c0_15], %24 {strides = array<i32>} : memref<1x24x128xf32, #tpu.memory_space<vmem>>, vector<1x8x128xf32>,
    return
  }
  func.func @transform_0(%arg0: i32) -> (i32, i32, i32) {
    %c0_i32 = arith.constant 0 : i32
    %c0_i32_0 = arith.constant 0 : i32
    %c0_i32_1 = arith.constant 0 : i32
    return %arg0, %c0_i32, %c0_i32_0 : i32, i32, i32
  }
  func.func @transform_1(%arg0: i32) -> (i32, i32) {
    %c0_i32 = arith.constant 0 : i32
    %c0_i32_0 = arith.constant 0 : i32
    %c0_i32_1 = arith.constant 0 : i32
    return %c0_i32, %c0_i32_0 : i32, i32
  }
  func.func @transform_2(%arg0: i32) -> (i32, i32) {
    %c0_i32 = arith.constant 0 : i32
    %c0_i32_0 = arith.constant 0 : i32
    %c0_i32_1 = arith.constant 0 : i32
    return %c0_i32, %c0_i32_0 : i32, i32
  }
  func.func @transform_3(%arg0: i32) -> (i32, i32) {
    %c0_i32 = arith.constant 0 : i32
    %c0_i32_0 = arith.constant 0 : i32
    %c0_i32_1 = arith.constant 0 : i32
    return %c0_i32, %c0_i32_0 : i32, i32
  }
  func.func @transform_4(%arg0: i32) -> (i32, i32, i32) {
    %c0_i32 = arith.constant 0 : i32
    %c0_i32_0 = arith.constant 0 : i32
    %c0_i32_1 = arith.constant 0 : i32
    return %arg0, %c0_i32, %c0_i32_0 : i32, i32, i32
  }
}

</mosaic_0001>

<llo_original>
// kernel: tpu_custom_call.1
$region0: #{tpu_custom_call.1}
  #allocation0 [shape = 'u32[]', space=smem, size = 0x4, offset = 0x4, fixed_abs, tag = 'smem constant byte address 0x4 - core index']
  #allocation1 [shape = 'u32[144,128]{1,0:T(1,128)}', space=vmem, size = 0x12000, scoped, tag = 'internal scratch']
  %s0 = inlined_call_operand.hbm [shape: f32[4,16,128], index: 0, kind: input, shape index: {}]
  %s1 = inlined_call_operand.vmem [shape: f32[16,1], index: 1, kind: input, shape index: {}]
  %s2 = inlined_call_operand.vmem [shape: f32[16,1], index: 2, kind: input, shape index: {}]
  %s3 = inlined_call_operand.vmem [shape: f32[8,48], index: 3, kind: input, shape index: {}]
  %s4 = inlined_call_operand.hbm [shape: f32[4,24,128], index: 4, kind: output, shape index: {}]
  %s5 = sld [smem:[#allocation0]]
  $region53: #{tpu_custom_call.1} parent=0
    _
  %s7 = ssub.s32 1, %s5
  %s8 = scalar_select 0, %s7, %s5
  $region1: #{tpu_custom_call.1} parent=0
    #allocation2 [shape = 'u8[16384]{0}', space=vmem, size = 0x4000, scoped, tag = 'input window, operand 0']
    #allocation3 [shape = 's32[2]{0}', space=sflag, size = 0x8, scoped, tag = 'scoped memory for tpu_custom_call.1']
    #allocation4 [shape = 's32[2]{0}', space=sflag, size = 0x8, scoped, tag = 'scoped memory for tpu_custom_call.1']
    #allocation5 [shape = 'u8[24576]{0}', space=vmem, size = 0x6000, scoped, tag = 'output window, operand 0']
    %9 = vsyncpa [#allocation3], 0
    %s10 = scalar_lea.sflag [#allocation3], 1
    %11 = vsyncpa %s10, 0
    %12 = vsyncpa [#allocation4], 0
    %s13 = scalar_lea.sflag [#allocation4], 1
    %14 = vsyncpa %s13, 0
    loop: start=0, step=1, limit=6
    $region2: #{tpu_custom_call.1} parent=1 // loop_pre_header
      _
    $region3: #{tpu_custom_call.1} parent=1 // loop_header
      %s16 = sphi 0, %s20
      %p17 = scmp.ge.s32.totalorder %s16, 6
      %s26 = sphi 0, %s28
      %s29 = sphi 0, %s26
      %s30 = sphi 0, %s29
      %s46 = sphi 0, %s30
      %s50 = sphi 0, %s50
      %s52 = sphi 0, %s50
      %s53 = sphi 0, %s52
      %s67 = sphi 0, %s53
      %s71 = sphi 0, %s71
      %s73 = sphi 0, %s71
      %s74 = sphi 0, %s73
      %s88 = sphi 0, %s74
      %s92 = sphi 0, %s92
      %s94 = sphi 0, %s92
      %s95 = sphi 0, %s94
      %s109 = sphi 0, %s95
      %s115 = sphi 0, %s117
      %s118 = sphi 0, %s115
      %s119 = sphi 0, %s118
      %s135 = sphi 0, %s119
    $region4: #{tpu_custom_call.1} parent=1 // loop_header_branch
      %19 = sbr.rel (%p17) target = $region8
    $region5: #{tpu_custom_call.1} parent=1 // loop_body
      %s21 = ssub.s32 %s16, 1
      %s22 = ssub.s32 %s16, 2
      %s23 = sadd.s32 %s16, 1
      %s24 = ssub.s32 %s16, %s23
      %p25 = scmp.eq.s32.totalorder %s24, 0
      %s27 = sadd.s32 %s26, 1
      %s28 = scalar_select %p25, %s26, %s27
      %p31 = pneg %p25
      %p32 = scmp.eq.s32.totalorder %s16, 3
      %p33 = por %p31, %p32
      %p34 = scmp.ne.s32.totalorder %s26, %s29
      %p35 = scmp.eq.s32.totalorder %s16, 0
      %p36 = por %p34, %p35
      %p37 = scmp.ne.s32.totalorder %s26, %s29
      %p38 = scmp.eq.s32.totalorder %s21, 3
      %p39 = por %p37, %p38
      %p40 = scmp.ne.s32.totalorder %s29, %s30
      %p41 = scmp.eq.s32.totalorder %s21, 0
      %p42 = por %p40, %p41
      %p43 = scmp.ne.s32.totalorder %s29, %s30
      %p44 = scmp.eq.s32.totalorder %s22, 3
      %p45 = por %p43, %p44
      %p47 = scmp.ne.s32.totalorder %s30, %s46
      %p48 = scmp.eq.s32.totalorder %s22, 0
      %p49 = por %p47, %p48
      %s51 = sadd.s32 %s50, 1
      %p54 = scmp.eq.s32.totalorder %s16, 3
      %p55 = scmp.ne.s32.totalorder %s50, %s52
      %p56 = scmp.eq.s32.totalorder %s16, 0
      %p57 = por %p55, %p56
      %p58 = scmp.ne.s32.totalorder %s50, %s52
      %p59 = scmp.eq.s32.totalorder %s21, 3
      %p60 = por %p58, %p59
      %p61 = scmp.ne.s32.totalorder %s52, %s53
      %p62 = scmp.eq.s32.totalorder %s21, 0
      %p63 = por %p61, %p62
      %p64 = scmp.ne.s32.totalorder %s52, %s53
      %p65 = scmp.eq.s32.totalorder %s22, 3
      %p66 = por %p64, %p65
      %p68 = scmp.ne.s32.totalorder %s53, %s67
      %p69 = scmp.eq.s32.totalorder %s22, 0
      %p70 = por %p68, %p69
      %s72 = sadd.s32 %s71, 1
      %p75 = scmp.eq.s32.totalorder %s16, 3
      %p76 = scmp.ne.s32.totalorder %s71, %s73
      %p77 = scmp.eq.s32.totalorder %s16, 0
      %p78 = por %p76, %p77
      %p79 = scmp.ne.s32.totalorder %s71, %s73
      %p80 = scmp.eq.s32.totalorder %s21, 3
      %p81 = por %p79, %p80
      %p82 = scmp.ne.s32.totalorder %s73, %s74
      %p83 = scmp.eq.s32.totalorder %s21, 0
      %p84 = por %p82, %p83
      %p85 = scmp.ne.s32.totalorder %s73, %s74
      %p86 = scmp.eq.s32.totalorder %s22, 3
      %p87 = por %p85, %p86
      %p89 = scmp.ne.s32.totalorder %s74, %s88
      %p90 = scmp.eq.s32.totalorder %s22, 0
      %p91 = por %p89, %p90
      %s93 = sadd.s32 %s92, 1
      %p96 = scmp.eq.s32.totalorder %s16, 3
      %p97 = scmp.ne.s32.totalorder %s92, %s94
      %p98 = scmp.eq.s32.totalorder %s16, 0
      %p99 = por %p97, %p98
      %p100 = scmp.ne.s32.totalorder %s92, %s94
      %p101 = scmp.eq.s32.totalorder %s21, 3
      %p102 = por %p100, %p101
      %p103 = scmp.ne.s32.totalorder %s94, %s95
      %p104 = scmp.eq.s32.totalorder %s21, 0
      %p105 = por %p103, %p104
      %p106 = scmp.ne.s32.totalorder %s94, %s95
      %p107 = scmp.eq.s32.totalorder %s22, 3
      %p108 = por %p106, %p107
      %p110 = scmp.ne.s32.totalorder %s95, %s109
      %p111 = scmp.eq.s32.totalorder %s22, 0
      %p112 = por %p110, %p111
      %s113 = ssub.s32 %s16, %s23
      %p114 = scmp.eq.s32.totalorder %s113, 0
      %s116 = sadd.s32 %s115, 1
      %s117 = scalar_select %p114, %s115, %s116
      %p120 = pneg %p114
      %p121 = scmp.eq.s32.totalorder %s16, 3
      %p122 = por %p120, %p121
      %p123 = scmp.ne.s32.totalorder %s115, %s118
      %p124 = scmp.eq.s32.totalorder %s16, 0
      %p125 = por %p123, %p124
      %p126 = scmp.ne.s32.totalorder %s115, %s118
      %p127 = scmp.eq.s32.totalorder %s21, 3
      %p128 = por %p126, %p127
      %p129 = scmp.ne.s32.totalorder %s118, %s119
      %p130 = scmp.eq.s32.totalorder %s21, 0
      %p131 = por %p129, %p130
      %p132 = scmp.ne.s32.totalorder %s118, %s119
      %p133 = scmp.eq.s32.totalorder %s22, 3
      %p134 = por %p132, %p133
      %p136 = scmp.ne.s32.totalorder %s119, %s135
      %p137 = scmp.eq.s32.totalorder %s22, 0
      %p138 = por %p136, %p137
      %p139 = scmp.le.s32.totalorder 1, %s16
      %p140 = scmp.lt.s32.totalorder %s16, 5
      %p141 = pnand %p139, %p140
      %p142 = pneg %p141
      // Predicated region
      $region9: #{tpu_custom_call.1} parent=5 // pred_check
        _
      $region10: #{tpu_custom_call.1} parent=5 // pred_check_branch
        %144 = sbr.rel (%p141) target = $region12
      $region11: #{tpu_custom_call.1} parent=5 // pred_region
        %s145 = ssub.s32 %s16, 1
        // Predicated region
        $region13: #{tpu_custom_call.1} parent=11 // pred_check
          %p146 = pneg %p63
        $region14: #{tpu_custom_call.1} parent=11 // pred_check_branch
          %148 = sbr.rel (%p146) target = $region16
        $region15: #{tpu_custom_call.1} parent=11 // pred_region
          _
        $region16: #{tpu_custom_call.1} parent=11 // pred_fallthru
          _
        // Predicated region
        $region17: #{tpu_custom_call.1} parent=11 // pred_check
          %p149 = pneg %p84
        $region18: #{tpu_custom_call.1} parent=11 // pred_check_branch
          %151 = sbr.rel (%p149) target = $region20
        $region19: #{tpu_custom_call.1} parent=11 // pred_region
          _
        $region20: #{tpu_custom_call.1} parent=11 // pred_fallthru
          _
        // Predicated region
        $region21: #{tpu_custom_call.1} parent=11 // pred_check
          %p152 = pneg %p105
        $region22: #{tpu_custom_call.1} parent=11 // pred_check_branch
          %154 = sbr.rel (%p152) target = $region24
        $region23: #{tpu_custom_call.1} parent=11 // pred_region
          _
        $region24: #{tpu_custom_call.1} parent=11 // pred_fallthru
          _
      $region12: #{tpu_custom_call.1} parent=5 // pred_fallthru
        _
      %p155 = scmp.lt.s32.totalorder %s16, 4
      // Predicated region
      $region25: #{tpu_custom_call.1} parent=5 // pred_check
        %p156 = pneg %p155
      $region26: #{tpu_custom_call.1} parent=5 // pred_check_branch
        %158 = sbr.rel (%p156) target = $region28
      $region27: #{tpu_custom_call.1} parent=5 // pred_region
        // Predicated region
        $region29: #{tpu_custom_call.1} parent=27 // pred_check
          %p159 = pneg %p36
        $region30: #{tpu_custom_call.1} parent=27 // pred_check_branch
          %161 = sbr.rel (%p159) target = $region32
        $region31: #{tpu_custom_call.1} parent=27 // pred_region
          %s162 = sand.u32 %s26, 1
          %s163 = scalar_lea.sflag [#allocation3], %s162
          %s164 = sand.u32 %s26, 1
          %s165 = smul.addr %s164, 16
          %s166 = scalar_lea.vmem [#allocation2], %s165
          %s168 = ssub.s32 256, 256
          %169 = vsyncadd %s163, %s168
          %s170 = smul.addr %s16, 2
          %s171 = smul.addr %s170, 128
          %s172 = scalar_lea.hbm %s0, %s171
          %s173 = sshll.u32 %s166, 4
          %s174 = int_to_ptr.vmem [resolvable:$true] %s173
          %179 = dma.hbm_to_vmem [thread:$0]  %s172, 256, %s174, %s163, 128, 128, 8
        $region32: #{tpu_custom_call.1} parent=27 // pred_fallthru
          _
      $region28: #{tpu_custom_call.1} parent=5 // pred_fallthru
        _
      %p180 = scmp.le.s32.totalorder 1, %s16
      %p181 = scmp.lt.s32.totalorder %s16, 5
      %p182 = pnand %p180, %p181
      %p183 = pneg %p182
      // Predicated region
      $region33: #{tpu_custom_call.1} parent=5 // pred_check
        _
      $region34: #{tpu_custom_call.1} parent=5 // pred_check_branch
        %185 = sbr.rel (%p182) target = $region36
      $region35: #{tpu_custom_call.1} parent=5 // pred_region
        %s186 = ssub.s32 %s16, 1
        %s187 = sand.u32 %s29, 1
        %s188 = scalar_lea.sflag [#allocation3], %s187
        %s189 = sand.u32 %s29, 1
        %s190 = smul.addr %s189, 16
        %s191 = scalar_lea.vmem [#allocation2], %s190
        // Predicated region
        $region37: #{tpu_custom_call.1} parent=35 // pred_check
          %p192 = pneg %p42
        $region38: #{tpu_custom_call.1} parent=35 // pred_check_branch
          %194 = sbr.rel (%p192) target = $region40
        $region39: #{tpu_custom_call.1} parent=35 // pred_region
          %195 = dma.done %s188, 256
        $region40: #{tpu_custom_call.1} parent=35 // pred_fallthru
          _
        %s196 = sand.u32 %s29, 1
        %s197 = scalar_lea.sflag [#allocation3], %s196
        %s198 = sand.u32 %s29, 1
        %s199 = smul.addr %s198, 16
        %s200 = scalar_lea.vmem [#allocation2], %s199
        %p201 = pneg %p42
        %p202 = pneg %p39
        %p203 = pneg %p63
        %p204 = pneg %p60
        %p205 = pneg %p84
        %p206 = pneg %p81
        %p207 = pneg %p105
        %p208 = pneg %p102
        %p209 = pneg %p131
        %p210 = pneg %p128
        %s211 = sand.u32 %s118, 1
        %s212 = scalar_lea.sflag [#allocation4], %s211
        %s213 = sand.u32 %s118, 1
        %s214 = smul.addr %s213, 24
        %s215 = scalar_lea.vmem [#allocation5], %s214
        %v216 = vld [vmem:[%s191] sm:$0xff]
        %v217 = vld [vmem:[%s191 + $0x8] sm:$0xff]
        %v218 = vld [vmem:[%s1] sm:$0xff]
        %v219 = vld [vmem:[%s1 + $0x8] sm:$0xff]
        %221 = vset.pattern.permute.xlu0 0
        %222 = vperm.xlu0 %221, %v218
        %v223 = vpop.permute.xlu0 %222
        %226 = vset.pattern.permute.xlu0 0
        %227 = vperm.xlu0 %226, %v219
        %v228 = vpop.permute.xlu0 %227
        %v230 = vmul.f32 %v216, %v223
        %v231 = vmul.f32 %v217, %v228
        %v232 = vld [vmem:[%s2] sm:$0xff]
        %v233 = vld [vmem:[%s2 + $0x8] sm:$0xff]
        %235 = vset.pattern.permute.xlu0 0
        %236 = vperm.xlu0 %235, %v232
        %v237 = vpop.permute.xlu0 %236
        %240 = vset.pattern.permute.xlu0 0
        %241 = vperm.xlu0 %240, %v233
        %v242 = vpop.permute.xlu0 %241
        %v244 = vadd.f32 %v230, %v237
        %v245 = vadd.f32 %v231, %v242
        %v246 = vmax.f32 %v244, 0.0
        %v247 = vmax.f32 %v245, 0.0
        %250 = vrot.lane.b32.xlu0 %v246, 1
        %v251 = vpop.permute.xlu0 %250
        %252 = vrot.lane.b32.xlu0 %v247, 1
        %v253 = vpop.permute.xlu0 %252
        %vm256 = vcmask 7168
        %v257 = vsel %vm256, 0.0, %v251
        %v258 = vsel %vm256, 0.0, %v253
        %259 = vrot.lane.b32.xlu0 %v246, 127
        %v260 = vpop.permute.xlu0 %259
        %261 = vrot.lane.b32.xlu0 %v247, 127
        %v262 = vpop.permute.xlu0 %261
        %vm265 = vcmask 1039360
        %v266 = vsel %vm265, %v260, 0.0
        %v267 = vsel %vm265, %v262, 0.0
        %v268 = vld [vmem:[%s3] sm:$0xff]
        %vm269 = vcmask 392192
        %v271 = vsel %vm269, %v268, 0
        %273 = vmatprep.subr.mxu0 0.0
        %274 = vmatpush1.msra.mxu0 %v257
        %275 = vmatprep.subr.mxu0 0.0
        %276 = vmatpush1.msra.mxu0 %v258
        %277 = vmatprep.subr.mxu0 0.0
        %278 = vmatpush1.msra.mxu0 %v246
        %279 = vmatprep.subr.mxu0 0.0
        %280 = vmatpush1.msra.mxu0 %v247
        %281 = vmatprep.subr.mxu0 0.0
        %282 = vmatpush1.msra.mxu0 %v266
        %283 = vmatprep.subr.mxu0 0.0
        %284 = vmatpush1.msra.mxu0 %v267
        %285 = vmatprep.subr.mxu0 0.0
        %286 = vmatpush1.msra.mxu0 0.0
        %287 = vmatprep.subr.mxu0 0.0
        %288 = vmatpush1.msra.mxu0 0.0
        %289 = vmatprep.subr.mxu0 0.0
        %290 = vmatpush1.msra.mxu0 0.0
        %291 = vmatprep.subr.mxu0 0.0
        %292 = vmatpush1.msra.mxu0 0.0
        %293 = vmatprep.subr.mxu0 0.0
        %294 = vmatpush1.msra.mxu0 0.0
        %295 = vmatprep.subr.mxu0 0.0
        %296 = vmatpush1.msra.mxu0 0.0
        %297 = vmatprep.subr.mxu0 0.0
        %298 = vmatpush1.msra.mxu0 0.0
        %299 = vmatprep.subr.mxu0 0.0
        %300 = vmatpush1.msra.mxu0 0.0
        %301 = vmatprep.subr.mxu0 0.0
        %302 = vmatpush1.msra.mxu0 0.0
        %303 = vmatprep.subr.mxu0 0.0
        %304 = vmatpush1.msra.mxu0 0.0
        %305 = vmatprep.subr.mxu0 0.0
        %306 = vmatpush1.msra.mxu0 0.0
        %307 = vmatprep.subr.mxu0 0.0
        %308 = vmatpush1.msra.mxu0 0.0
        %309 = vmatprep.subr.mxu0 0.0
        %310 = vmatpush1.msra.mxu0 0.0
        %311 = vmatprep.subr.mxu0 0.0
        %312 = vmatpush1.msra.mxu0 0.0
        %313 = vmatprep.subr.mxu0 0.0
        %314 = vmatpush1.msra.mxu0 0.0
        %315 = vmatprep.subr.mxu0 0.0
        %316 = vmatpush1.msra.mxu0 0.0
        %317 = vmatprep.subr.mxu0 0.0
        %318 = vmatpush1.msra.mxu0 0.0
        %319 = vmatprep.subr.mxu0 0.0
        %320 = vmatpush1.msra.mxu0 0.0
        %321 = vmatprep.subr.mxu0 0.0
        %322 = vmatpush1.msra.mxu0 0.0
        %323 = vmatprep.subr.mxu0 0.0
        %324 = vmatpush1.msra.mxu0 0.0
        %325 = vmatprep.subr.mxu0 0.0
        %326 = vmatpush1.msra.mxu0 0.0
        %327 = vmatprep.subr.mxu0 0.0
        %328 = vmatpush1.msra.mxu0 0.0
        %329 = vmatprep.subr.mxu0 0.0
        %330 = vmatpush1.msra.mxu0 0.0
        %331 = vmatprep.subr.mxu0 0.0
        %332 = vmatpush1.msra.mxu0 0.0
        %333 = vmatprep.subr.mxu0 0.0
        %334 = vmatpush1.msra.mxu0 0.0
        %335 = vmatprep.subr.mxu0 0.0
        %336 = vmatpush1.msra.mxu0 0.0
        %337 = vmatprep.mubr.f32.mxu0 0.0
        %338 = vmatmul.mubr.f32.gmra.mrb[0].mxu0 %v271
        %v339 = vpop.f32.mrb[0].mxu0
        %v340 = vadd.f32 0.0, %v339
        %v341 = vpop.f32.mrb[0].mxu0
        %342 = vdwg.mxu0
        %343 = vst [vmem:[%s215] sm:$0xff] %v216
        %344 = vst [vmem:[%s215 + $0x8] sm:$0xff] %v217
        %345 = vst [vmem:[%s215 + $0x10] sm:$0xff] %v340
        %s346 = sand.u32 %s118, 1
        %s347 = scalar_lea.sflag [#allocation4], %s346
        %s348 = sand.u32 %s118, 1
        %s349 = smul.addr %s348, 24
        %s350 = scalar_lea.vmem [#allocation5], %s349
        // Predicated region
        $region41: #{tpu_custom_call.1} parent=35 // pred_check
          %p351 = pneg %p128
        $region42: #{tpu_custom_call.1} parent=35 // pred_check_branch
          %353 = sbr.rel (%p351) target = $region44
        $region43: #{tpu_custom_call.1} parent=35 // pred_region
          %s355 = ssub.s32 384, 384
          %356 = vsyncadd %s347, %s355
          %s357 = smul.addr %s21, 3
          %s358 = smul.addr %s357, 128
          %s359 = scalar_lea.hbm %s4, %s358
          %s360 = sshll.u32 %s350, 4
          %s361 = int_to_ptr.vmem [resolvable:$true] %s360
          %366 = dma.vmem_to_hbm [thread:$0]  %s361, 384, %s359, %s347, 128, 128, 8
        $region44: #{tpu_custom_call.1} parent=35 // pred_fallthru
          _
      $region36: #{tpu_custom_call.1} parent=5 // pred_fallthru
        _
      %p367 = scmp.le.s32.totalorder 2, %s16
      // Predicated region
      $region45: #{tpu_custom_call.1} parent=5 // pred_check
        %p368 = pneg %p367
      $region46: #{tpu_custom_call.1} parent=5 // pred_check_branch
        %370 = sbr.rel (%p368) target = $region48
      $region47: #{tpu_custom_call.1} parent=5 // pred_region
        %s371 = ssub.s32 %s16, 2
        // Predicated region
        $region49: #{tpu_custom_call.1} parent=47 // pred_check
          %p372 = pneg %p134
        $region50: #{tpu_custom_call.1} parent=47 // pred_check_branch
          %374 = sbr.rel (%p372) target = $region52
        $region51: #{tpu_custom_call.1} parent=47 // pred_region
          %s375 = sand.u32 %s119, 1
          %s376 = scalar_lea.sflag [#allocation4], %s375
          %s377 = sand.u32 %s119, 1
          %s378 = smul.addr %s377, 24
          %s379 = scalar_lea.vmem [#allocation5], %s378
          %380 = dma.done %s376, 384
        $region52: #{tpu_custom_call.1} parent=47 // pred_fallthru
          _
      $region48: #{tpu_custom_call.1} parent=5 // pred_fallthru
        _
    $region6: #{tpu_custom_call.1} parent=1 // loop_footer
      %s20 = sadd.s32 1, %s16
    $region7: #{tpu_custom_call.1} parent=1 // loop_footer_branch
      %15 = sbr.rel target = $region3
    $region8: #{tpu_custom_call.1} parent=1 // loop_exit
      _
    %381 = vsyncpa [#allocation3], 1
    %s382 = scalar_lea.sflag [#allocation3], 1
    %383 = vsyncpa %s382, 1
    %384 = vsyncpa [#allocation4], 1
    %s385 = scalar_lea.sflag [#allocation4], 1
    %386 = vsyncpa %s385, 1

</llo_original>
